<compile_context>
chip_gen: v5e
topology: v5e:2x2
jax: 0.10.0
libtpu: 0.0.40
codegen_flags: <defaults>
</compile_context>

<pallas_src>
import functools

import jax
import jax.numpy as jnp
from jax.experimental import pallas as pl
from jax.experimental.pallas import tpu as pltpu


# ----------------------------- Pallas kernel ------------------------------- #

def _meta_hetero_kernel(tid_ref, x_ref, wf_ref, bf_ref, o_ref, *, num_types, out_p):
    """Grid = (row_tiles,).  wf/bf are type-fused, lane-padded and resident.

    tid_ref: (tm, 1) int32     dense type index per row (-1 => no type)
    x_ref:   (tm, in) bf16     row tile
    wf_ref:  (in, T*out_p) bf16  [type-major column blocks]
    bf_ref:  (1, T*out_p) f32
    o_ref:   (tm, out_p)       output tile (lane-dense)
    """
    # One wide MXU matmul per row tile, f32 accumulation; bias added in f32.
    y = jnp.dot(x_ref[...], wf_ref[...], preferred_element_type=jnp.float32)
    y = y + bf_ref[...]

    tid = tid_ref[...]                                    # (tm, 1) int32
    out = jnp.zeros((y.shape[0], out_p), jnp.float32)
    for t in range(num_types):                            # static unroll, T small
        # 128-aligned static lane slice; types are mutually exclusive per row.
        out = jnp.where(tid == t, y[:, t * out_p:(t + 1) * out_p], out)

    o_ref[...] = out.astype(o_ref.dtype)


def _round_up(x, m):
    return ((x + m - 1) // m) * m


@functools.partial(jax.jit, static_argnames=("tm",))
def meta_hetero_linear_pallas(x, type_idx, W, B, *, tm=256):
    """x: (N, in_ch); type_idx: (N,) int32 in [0, T) or -1; W: (T, in, out); B: (T, out)."""
    N, in_ch = x.shape
    T, _, out_ch = W.shape

    out_p = _round_up(out_ch, 128)          # lane-dense output / matmul N-dim
    n_p = _round_up(max(N, tm), tm)         # row padding (padded rows -> type -1)

    tid = type_idx.astype(jnp.int32)
    x_p = x
    if n_p != N:
        x_p = jnp.pad(x, ((0, n_p - N), (0, 0)))
        tid = jnp.pad(tid, (0, n_p - N), constant_values=-1)
    tid2d = tid.reshape(n_p, 1)

    # Type-fused, zero-padded weights/bias (kept fully resident in VMEM).
    W_pad = jnp.pad(W, ((0, 0), (0, 0), (0, out_p - out_ch)))          # (T, in, out_p)
    B_pad = jnp.pad(B, ((0, 0), (0, out_p - out_ch)))                  # (T, out_p)
    W_f = jnp.transpose(W_pad, (1, 0, 2)).reshape(in_ch, T * out_p)    # (in, T*out_p)
    B_f = B_pad.reshape(1, T * out_p).astype(jnp.float32)

    # bf16 MXU inputs, f32 accumulation (bias/mask math stays f32/i32).
    x_mm = x_p.astype(jnp.bfloat16)
    W_mm = W_f.astype(jnp.bfloat16)

    kernel = functools.partial(_meta_hetero_kernel, num_types=T, out_p=out_p)
    out_padded = pl.pallas_call(
        kernel,
        out_shape=jax.ShapeDtypeStruct((n_p, out_p), x.dtype),
        grid_spec=pltpu.PrefetchScalarGridSpec(
            num_scalar_prefetch=0,
            grid=(n_p // tm,),
            in_specs=[
                pl.BlockSpec((tm, 1), lambda i: (i, 0)),                 # type ids
                pl.BlockSpec((tm, in_ch), lambda i: (i, 0)),             # x rows
                pl.BlockSpec((in_ch, T * out_p), lambda i: (0, 0)),      # fused W (resident)
                pl.BlockSpec((1, T * out_p), lambda i: (0, 0)),          # fused b (resident)
            ],
            out_specs=pl.BlockSpec((tm, out_p), lambda i: (i, 0)),
        ),
        compiler_params=pltpu.CompilerParams(
            dimension_semantics=("parallel",),
            # Raised vs. v5e's 16 MiB scoped default; still safe on v7x (64 MiB
            # physical). Lower tm / this limit if scaling tiles up on v7x.
            vmem_limit_bytes=32 * 1024 * 1024,
        ),
    )(tid2d, x_mm, W_mm, B_f)

    return out_padded[:N, :out_ch]


# ------------------------- Parameter generator (glue) ----------------------- #

def _xavier(key, shape):
    fan_in, fan_out = shape[0], shape[1]
    limit = (6.0 / (fan_in + fan_out)) ** 0.5
    return jax.random.uniform(key, shape, jnp.float32, -limit, limit)


def init_generator_params(key, memory_size, in_ch, out_ch):
    """3-layer MLP weight/bias generators (ParameterGenerator, dynamic=True)."""
    hidden = memory_size // 2
    dims_w = [(memory_size, hidden), (hidden, hidden), (hidden, in_ch * out_ch)]
    dims_b = [(memory_size, hidden), (hidden, hidden), (hidden, out_ch)]
    keys = jax.random.split(key, 2 * len(dims_w))
    wg = [(_xavier(keys[2 * i], d), jnp.zeros((d[1],), jnp.float32))
          for i, d in enumerate(dims_w)]
    bg = [(_xavier(keys[2 * i + 1], d), jnp.zeros((d[1],), jnp.float32))
          for i, d in enumerate(dims_b)]
    return {"weight_gen": wg, "bias_gen": bg}


def _mlp(vec, layers):
    h = vec
    for i, (w, b) in enumerate(layers):
        h = h @ w + b
        if i < len(layers) - 1:
            h = jnp.maximum(h, 0.0)   # ReLU between linears, none after last
    return h


def generate_type_params(gen_params, memory_vec, in_ch, out_ch):
    """lin_gen(edge_feas_dict[i]) -> (W_i (in, out), b_i (out,))."""
    w = _mlp(memory_vec, gen_params["weight_gen"]).reshape(in_ch, out_ch)
    b = _mlp(memory_vec, gen_params["bias_gen"]).reshape(out_ch)
    return w, b


# --------------------------------- Demo ------------------------------------ #

if __name__ == "__main__":
    memory_size = 32          # hidden_channels = memory_size // 2 = 16
    in_channels = 16
    out_channels = 32
    N = 512                   # rows; 2 row tiles at tm=256 (keeps both v7x TCs busy)
    type_keys = [0, 1, 2]     # edge_feas_dict keys

    key = jax.random.PRNGKey(0)
    k_x, k_tv, k_gen, *k_mem = jax.random.split(key, 3 + len(type_keys))

    x = jax.random.normal(k_x, (N, in_channels), jnp.float32)
    # Draw raw type ids in [0, 4): id 3 has no dict key -> exercises the
    # "unmatched row -> 0" path (PyTorch would leave those rows uninitialized).
    type_vec = jax.random.randint(k_tv, (N,), 0, len(type_keys) + 1, jnp.int32)
    edge_feas_dict = {
        k: jax.random.normal(k_mem[i], (memory_size,), jnp.float32)
        for i, k in enumerate(type_keys)
    }

    gen_params = init_generator_params(k_gen, memory_size, in_channels, out_channels)

    # Build stacked per-type (W, b) from the generator MLPs (plain-JAX glue).
    Ws, Bs = [], []
    for k in type_keys:
        w_i, b_i = generate_type_params(gen_params, edge_feas_dict[k],
                                        in_channels, out_channels)
        Ws.append(w_i)
        Bs.append(b_i)
    W = jnp.stack(Ws, axis=0)               # (T, in, out)
    B = jnp.stack(Bs, axis=0)               # (T, out)

    # Map raw type ids -> dense [0, T) indices (unmatched rows -> -1 -> zero output).
    key_arr = jnp.asarray(type_keys, jnp.int32)
    match = type_vec[:, None] == key_arr[None, :]         # (N, T)
    type_idx = jnp.where(match.any(-1), jnp.argmax(match, -1), -1).astype(jnp.int32)

    out = meta_hetero_linear_pallas(x, type_idx, W, B, tm=256)
    out = jax.block_until_ready(out)

    # Reference (plain JAX) using the same bf16-rounded matmul inputs.
    x_bf = x.astype(jnp.bfloat16).astype(jnp.float32)
    safe_idx = jnp.maximum(type_idx, 0)
    W_bf = W[safe_idx].astype(jnp.bfloat16).astype(jnp.float32)
    ref = jnp.einsum("ni,nio->no", x_bf, W_bf) + B[safe_idx]
    ref = jnp.where((type_idx >= 0)[:, None], ref, 0.0)

    assert out.shape == (N, out_channels)
    assert jnp.allclose(out, ref, atol=2e-3, rtol=2e-3)

    print("KERNEL_OK")
</pallas_src>

<mosaic_0001>
module attributes {stable_mosaic.version = 11 : i64} {
  func.func @_meta_hetero_kernel(%arg0: i32, %arg1: memref<256x1xi32, #tpu.memory_space<vmem>>, %arg2: memref<256x16xbf16, #tpu.memory_space<vmem>>, %arg3: memref<16x384xbf16, #tpu.memory_space<vmem>>, %arg4: memref<1x384xf32, #tpu.memory_space<vmem>>, %arg5: memref<256x128xf32, #tpu.memory_space<vmem>>) attributes {dimension_semantics = [#tpu.dimension_semantics<parallel>], iteration_bounds = array<i64: 2>, scalar_prefetch = 0 : i64, scratch_operands = 0 : i64, tpu.core_type = #tpu.core_type<tc>, window_params = [{transform_indices = @transform_0, window_bounds = array<i64: 256, 1>}, {transform_indices = @transform_1, window_bounds = array<i64: 256, 16>}, {pipeline_mode = #tpu.pipeline_mode<synchronous>, transform_indices = @transform_2, window_bounds = array<i64: 16, 384>}, {pipeline_mode = #tpu.pipeline_mode<synchronous>, transform_indices = @transform_3, window_bounds = array<i64: 1, 384>}, {transform_indices = @transform_4, window_bounds = array<i64: 256, 128>}]} {
    %c0 = arith.constant 0 : index
    %c0_0 = arith.constant 0 : index
    %0 = vector.load %arg2[%c0, %c0_0] : memref<256x16xbf16, #tpu.memory_space<vmem>>, vector<256x16xbf16>
    %c0_1 = arith.constant 0 : index
    %c0_2 = arith.constant 0 : index
    %1 = vector.load %arg3[%c0_1, %c0_2] : memref<16x384xbf16, #tpu.memory_space<vmem>>, vector<16x384xbf16>
    %cst = arith.constant dense<0.000000e+00> : vector<256x384xf32>
    %2 = tpu.matmul %0, %1, %cst {dimension_numbers = #tpu.dot_dimension_numbers<[1], [0], [0], [1], [0, 0, 1, 1], [], []>} : vector<256x16xbf16>, vector<16x384xbf16>, vector<256x384xf32> -> vector<256x384xf32>
    %c0_3 = arith.constant 0 : index
    %c0_4 = arith.constant 0 : index
    %3 = vector.load %arg4[%c0_3, %c0_4] : memref<1x384xf32, #tpu.memory_space<vmem>>, vector<1x384xf32>
    %4 = vector.broadcast %3 : vector<1x384xf32> to vector<256x384xf32>
    %5 = arith.addf %2, %4 : vector<256x384xf32>
    %c0_5 = arith.constant 0 : index
    %c0_6 = arith.constant 0 : index
    %6 = vector.load %arg1[%c0_5, %c0_6] : memref<256x1xi32, #tpu.memory_space<vmem>>, vector<256x1xi32>
    %cst_7 = arith.constant 0.000000e+00 : f32
    %7 = vector.broadcast %cst_7 : f32 to vector<256x128xf32>
    %c0_i32 = arith.constant 0 : i32
    %8 = vector.broadcast %c0_i32 : i32 to vector<256x1xi32>
    %9 = arith.cmpi eq, %6, %8 : vector<256x1xi32>
    %10 = vector.extract_strided_slice %5 {offsets = [0, 0], sizes = [256, 128], strides = [1, 1]} : vector<256x384xf32> to vector<256x128xf32>
    %11 = vector.shape_cast %9 : vector<256x1xi1> to vector<256x1xi1>
    %12 = vector.broadcast %11 : vector<256x1xi1> to vector<256x128xi1>
    %13 = arith.select %12, %10, %7 : vector<256x128xi1>, vector<256x128xf32>
    %c1_i32 = arith.constant 1 : i32
    %14 = vector.broadcast %c1_i32 : i32 to vector<256x1xi32>
    %15 = arith.cmpi eq, %6, %14 : vector<256x1xi32>
    %16 = vector.extract_strided_slice %5 {offsets = [0, 128], sizes = [256, 128], strides = [1, 1]} : vector<256x384xf32> to vector<256x128xf32>
    %17 = vector.shape_cast %15 : vector<256x1xi1> to vector<256x1xi1>
    %18 = vector.broadcast %17 : vector<256x1xi1> to vector<256x128xi1>
    %19 = arith.select %18, %16, %13 : vector<256x128xi1>, vector<256x128xf32>
    %c2_i32 = arith.constant 2 : i32
    %20 = vector.broadcast %c2_i32 : i32 to vector<256x1xi32>
    %21 = arith.cmpi eq, %6, %20 : vector<256x1xi32>
    %22 = vector.extract_strided_slice %5 {offsets = [0, 256], sizes = [256, 128], strides = [1, 1]} : vector<256x384xf32> to vector<256x128xf32>
    %23 = vector.shape_cast %21 : vector<256x1xi1> to vector<256x1xi1>
    %24 = vector.broadcast %23 : vector<256x1xi1> to vector<256x128xi1>
    %25 = arith.select %24, %22, %19 : vector<256x128xi1>, vector<256x128xf32>
    %c0_8 = arith.constant 0 : index
    %c0_9 = arith.constant 0 : index
    %26 = vector.load %arg5[%c0_8, %c0_9] : memref<256x128xf32, #tpu.memory_space<vmem>>, vector<256x128xf32>
    tpu.vector_store %arg5[%c0_8, %c0_9], %25 {strides = array<i32>} : memref<256x128xf32, #tpu.memory_space<vmem>>, vector<256x128xf32>,
    return
  }
  func.func @transform_0(%arg0: i32) -> (i32, i32) {
    %c0_i32 = arith.constant 0 : i32
    %c0_i32_0 = arith.constant 0 : i32
    return %arg0, %c0_i32 : i32, i32
  }
  func.func @transform_1(%arg0: i32) -> (i32, i32) {
    %c0_i32 = arith.constant 0 : i32
    %c0_i32_0 = arith.constant 0 : i32
    return %arg0, %c0_i32 : i32, i32
  }
  func.func @transform_2(%arg0: i32) -> (i32, i32) {
    %c0_i32 = arith.constant 0 : i32
    %c0_i32_0 = arith.constant 0 : i32
    %c0_i32_1 = arith.constant 0 : i32
    return %c0_i32, %c0_i32_0 : i32, i32
  }
  func.func @transform_3(%arg0: i32) -> (i32, i32) {
    %c0_i32 = arith.constant 0 : i32
    %c0_i32_0 = arith.constant 0 : i32
    %c0_i32_1 = arith.constant 0 : i32
    return %c0_i32, %c0_i32_0 : i32, i32
  }
  func.func @transform_4(%arg0: i32) -> (i32, i32) {
    %c0_i32 = arith.constant 0 : i32
    %c0_i32_0 = arith.constant 0 : i32
    return %arg0, %c0_i32 : i32, i32
  }
}

</mosaic_0001>

<llo_original>
// kernel: meta_hetero_linear_pallas.1
$region0: #{meta_hetero_linear_pallas.1}
  #allocation0 [shape = 'u32[]', space=smem, size = 0x4, offset = 0x4, fixed_abs, tag = 'smem constant byte address 0x4 - core index']
  #allocation1 [shape = 'u32[72,128]{1,0:T(1,128)}', space=vmem, size = 0x9000, scoped, tag = 'internal scratch']
  %s0 = inlined_call_operand.vmem [shape: s32[512,1], index: 0, kind: input, shape index: {}]
  %s1 = inlined_call_operand.vmem [shape: bf16[512,16], index: 1, kind: input, shape index: {}]
  %s2 = inlined_call_operand.vmem [shape: bf16[16,384], index: 2, kind: input, shape index: {}]
  %s3 = inlined_call_operand.vmem [shape: f32[1,384], index: 3, kind: input, shape index: {}]
  %s4 = inlined_call_operand.vmem [shape: f32[512,128], index: 4, kind: output, shape index: {}]
  %s5 = sld [smem:[#allocation0]]
  $region49: #{meta_hetero_linear_pallas.1} parent=0
    _
  %s7 = ssub.s32 1, %s5
  %s8 = scalar_select 0, %s7, %s5
  loop: start=0, step=1, limit=4
  $region2: #{meta_hetero_linear_pallas.1} parent=0 // loop_pre_header
    _
  $region3: #{meta_hetero_linear_pallas.1} parent=0 // loop_header
    %s10 = sphi 0, %s14
    %p11 = scmp.ge.s32.totalorder %s10, 4
    %s20 = sphi 0, %s22
    %s23 = sphi 0, %s20
    %s24 = sphi 0, %s23
    %s40 = sphi 0, %s24
    %s46 = sphi 0, %s48
    %s49 = sphi 0, %s46
    %s50 = sphi 0, %s49
    %s66 = sphi 0, %s50
    %s70 = sphi 0, %s70
    %s72 = sphi 0, %s70
    %s73 = sphi 0, %s72
    %s87 = sphi 0, %s73
    %s91 = sphi 0, %s91
    %s93 = sphi 0, %s91
    %s94 = sphi 0, %s93
    %s108 = sphi 0, %s94
    %s114 = sphi 0, %s116
    %s117 = sphi 0, %s114
    %s118 = sphi 0, %s117
    %s134 = sphi 0, %s118
  $region4: #{meta_hetero_linear_pallas.1} parent=0 // loop_header_branch
    %13 = sbr.rel (%p11) target = $region8
  $region5: #{meta_hetero_linear_pallas.1} parent=0 // loop_body
    %s15 = ssub.s32 %s10, 1
    %s16 = ssub.s32 %s10, 2
    %s17 = sadd.s32 %s10, 1
    %s18 = ssub.s32 %s10, %s17
    %p19 = scmp.eq.s32.totalorder %s18, 0
    %s21 = sadd.s32 %s20, 1
    %s22 = scalar_select %p19, %s20, %s21
    %p25 = pneg %p19
    %p26 = scmp.eq.s32.totalorder %s10, 1
    %p27 = por %p25, %p26
    %p28 = scmp.ne.s32.totalorder %s20, %s23
    %p29 = scmp.eq.s32.totalorder %s10, 0
    %p30 = por %p28, %p29
    %p31 = scmp.ne.s32.totalorder %s20, %s23
    %p32 = scmp.eq.s32.totalorder %s15, 1
    %p33 = por %p31, %p32
    %p34 = scmp.ne.s32.totalorder %s23, %s24
    %p35 = scmp.eq.s32.totalorder %s15, 0
    %p36 = por %p34, %p35
    %p37 = scmp.ne.s32.totalorder %s23, %s24
    %p38 = scmp.eq.s32.totalorder %s16, 1
    %p39 = por %p37, %p38
    %p41 = scmp.ne.s32.totalorder %s24, %s40
    %p42 = scmp.eq.s32.totalorder %s16, 0
    %p43 = por %p41, %p42
    %s44 = ssub.s32 %s10, %s17
    %p45 = scmp.eq.s32.totalorder %s44, 0
    %s47 = sadd.s32 %s46, 1
    %s48 = scalar_select %p45, %s46, %s47
    %p51 = pneg %p45
    %p52 = scmp.eq.s32.totalorder %s10, 1
    %p53 = por %p51, %p52
    %p54 = scmp.ne.s32.totalorder %s46, %s49
    %p55 = scmp.eq.s32.totalorder %s10, 0
    %p56 = por %p54, %p55
    %p57 = scmp.ne.s32.totalorder %s46, %s49
    %p58 = scmp.eq.s32.totalorder %s15, 1
    %p59 = por %p57, %p58
    %p60 = scmp.ne.s32.totalorder %s49, %s50
    %p61 = scmp.eq.s32.totalorder %s15, 0
    %p62 = por %p60, %p61
    %p63 = scmp.ne.s32.totalorder %s49, %s50
    %p64 = scmp.eq.s32.totalorder %s16, 1
    %p65 = por %p63, %p64
    %p67 = scmp.ne.s32.totalorder %s50, %s66
    %p68 = scmp.eq.s32.totalorder %s16, 0
    %p69 = por %p67, %p68
    %s71 = sadd.s32 %s70, 1
    %p74 = scmp.eq.s32.totalorder %s10, 1
    %p75 = scmp.ne.s32.totalorder %s70, %s72
    %p76 = scmp.eq.s32.totalorder %s10, 0
    %p77 = por %p75, %p76
    %p78 = scmp.ne.s32.totalorder %s70, %s72
    %p79 = scmp.eq.s32.totalorder %s15, 1
    %p80 = por %p78, %p79
    %p81 = scmp.ne.s32.totalorder %s72, %s73
    %p82 = scmp.eq.s32.totalorder %s15, 0
    %p83 = por %p81, %p82
    %p84 = scmp.ne.s32.totalorder %s72, %s73
    %p85 = scmp.eq.s32.totalorder %s16, 1
    %p86 = por %p84, %p85
    %p88 = scmp.ne.s32.totalorder %s73, %s87
    %p89 = scmp.eq.s32.totalorder %s16, 0
    %p90 = por %p88, %p89
    %s92 = sadd.s32 %s91, 1
    %p95 = scmp.eq.s32.totalorder %s10, 1
    %p96 = scmp.ne.s32.totalorder %s91, %s93
    %p97 = scmp.eq.s32.totalorder %s10, 0
    %p98 = por %p96, %p97
    %p99 = scmp.ne.s32.totalorder %s91, %s93
    %p100 = scmp.eq.s32.totalorder %s15, 1
    %p101 = por %p99, %p100
    %p102 = scmp.ne.s32.totalorder %s93, %s94
    %p103 = scmp.eq.s32.totalorder %s15, 0
    %p104 = por %p102, %p103
    %p105 = scmp.ne.s32.totalorder %s93, %s94
    %p106 = scmp.eq.s32.totalorder %s16, 1
    %p107 = por %p105, %p106
    %p109 = scmp.ne.s32.totalorder %s94, %s108
    %p110 = scmp.eq.s32.totalorder %s16, 0
    %p111 = por %p109, %p110
    %s112 = ssub.s32 %s10, %s17
    %p113 = scmp.eq.s32.totalorder %s112, 0
    %s115 = sadd.s32 %s114, 1
    %s116 = scalar_select %p113, %s114, %s115
    %p119 = pneg %p113
    %p120 = scmp.eq.s32.totalorder %s10, 1
    %p121 = por %p119, %p120
    %p122 = scmp.ne.s32.totalorder %s114, %s117
    %p123 = scmp.eq.s32.totalorder %s10, 0
    %p124 = por %p122, %p123
    %p125 = scmp.ne.s32.totalorder %s114, %s117
    %p126 = scmp.eq.s32.totalorder %s15, 1
    %p127 = por %p125, %p126
    %p128 = scmp.ne.s32.totalorder %s117, %s118
    %p129 = scmp.eq.s32.totalorder %s15, 0
    %p130 = por %p128, %p129
    %p131 = scmp.ne.s32.totalorder %s117, %s118
    %p132 = scmp.eq.s32.totalorder %s16, 1
    %p133 = por %p131, %p132
    %p135 = scmp.ne.s32.totalorder %s118, %s134
    %p136 = scmp.eq.s32.totalorder %s16, 0
    %p137 = por %p135, %p136
    %p138 = scmp.le.s32.totalorder 1, %s10
    %p139 = scmp.lt.s32.totalorder %s10, 3
    %p140 = pnand %p138, %p139
    %p141 = pneg %p140
    // Predicated region
    $region9: #{meta_hetero_linear_pallas.1} parent=5 // pred_check
      _
    $region10: #{meta_hetero_linear_pallas.1} parent=5 // pred_check_branch
      %143 = sbr.rel (%p140) target = $region12
    $region11: #{meta_hetero_linear_pallas.1} parent=5 // pred_region
      %s144 = ssub.s32 %s10, 1
      // Predicated region
      $region13: #{meta_hetero_linear_pallas.1} parent=11 // pred_check
        %p145 = pneg %p83
      $region14: #{meta_hetero_linear_pallas.1} parent=11 // pred_check_branch
        %147 = sbr.rel (%p145) target = $region16
      $region15: #{meta_hetero_linear_pallas.1} parent=11 // pred_region
        _
      $region16: #{meta_hetero_linear_pallas.1} parent=11 // pred_fallthru
        _
      // Predicated region
      $region17: #{meta_hetero_linear_pallas.1} parent=11 // pred_check
        %p148 = pneg %p104
      $region18: #{meta_hetero_linear_pallas.1} parent=11 // pred_check_branch
        %150 = sbr.rel (%p148) target = $region20
      $region19: #{meta_hetero_linear_pallas.1} parent=11 // pred_region
        _
      $region20: #{meta_hetero_linear_pallas.1} parent=11 // pred_fallthru
        _
    $region12: #{meta_hetero_linear_pallas.1} parent=5 // pred_fallthru
      _
    %p151 = scmp.lt.s32.totalorder %s10, 2
    // Predicated region
    $region21: #{meta_hetero_linear_pallas.1} parent=5 // pred_check
      %p152 = pneg %p151
    $region22: #{meta_hetero_linear_pallas.1} parent=5 // pred_check_branch
      %154 = sbr.rel (%p152) target = $region24
    $region23: #{meta_hetero_linear_pallas.1} parent=5 // pred_region
      // Predicated region
      $region25: #{meta_hetero_linear_pallas.1} parent=23 // pred_check
        %p155 = pneg %p30
      $region26: #{meta_hetero_linear_pallas.1} parent=23 // pred_check_branch
        %157 = sbr.rel (%p155) target = $region28
      $region27: #{meta_hetero_linear_pallas.1} parent=23 // pred_region
        %s158 = smul.u32 32, %s10
        %p159 = scmp.lt.s32.totalorder %s158, 63
        %s160 = scalar_select %p159, %s158, 63
        %s161 = smul.addr %s160, 8
        %s162 = scalar_lea.vmem %s0, %s161
        %s163 = smul.u32 32, %s10
      $region28: #{meta_hetero_linear_pallas.1} parent=23 // pred_fallthru
        _
      // Predicated region
      $region29: #{meta_hetero_linear_pallas.1} parent=23 // pred_check
        %p164 = pneg %p56
      $region30: #{meta_hetero_linear_pallas.1} parent=23 // pred_check_branch
        %166 = sbr.rel (%p164) target = $region32
      $region31: #{meta_hetero_linear_pallas.1} parent=23 // pred_region
        %s167 = smul.u32 32, %s10
        %p168 = scmp.lt.s32.totalorder %s167, 63
        %s169 = scalar_select %p168, %s167, 63
        %s170 = smul.addr %s169, 4
        %s171 = scalar_lea.vmem %s1, %s170
        %s172 = smul.u32 32, %s10
      $region32: #{meta_hetero_linear_pallas.1} parent=23 // pred_fallthru
        _
    $region24: #{meta_hetero_linear_pallas.1} parent=5 // pred_fallthru
      _
    %p173 = scmp.le.s32.totalorder 1, %s10
    %p174 = scmp.lt.s32.totalorder %s10, 3
    %p175 = pnand %p173, %p174
    %p176 = pneg %p175
    // Predicated region
    $region33: #{meta_hetero_linear_pallas.1} parent=5 // pred_check
      _
    $region34: #{meta_hetero_linear_pallas.1} parent=5 // pred_check_branch
      %178 = sbr.rel (%p175) target = $region36
    $region35: #{meta_hetero_linear_pallas.1} parent=5 // pred_region
      %s179 = ssub.s32 %s10, 1
      %s180 = smul.u32 32, %s15
      %p181 = scmp.lt.s32.totalorder %s180, 63
      %s182 = scalar_select %p181, %s180, 63
      %s183 = smul.addr %s182, 8
      %s184 = scalar_lea.vmem %s0, %s183
      %p185 = pneg %p36
      %p186 = pneg %p33
      %s187 = smul.u32 32, %s15
      %p188 = scmp.lt.s32.totalorder %s187, 63
      %s189 = scalar_select %p188, %s187, 63
      %s190 = smul.addr %s189, 4
      %s191 = scalar_lea.vmem %s1, %s190
      %p192 = pneg %p62
      %p193 = pneg %p59
      %p194 = pneg %p83
      %p195 = pneg %p80
      %p196 = pneg %p104
      %p197 = pneg %p101
      %p198 = pneg %p130
      %p199 = pneg %p127
      %s200 = smul.u32 32, %s15
      %p201 = scmp.lt.s32.totalorder %s200, 63
      %s202 = scalar_select %p201, %s200, 63
      %s203 = smul.addr %s202, 8
      %s204 = scalar_lea.vmem %s4, %s203
      %s205 = smul.u32 32, %s15
      %p206 = scmp.lt.s32.totalorder %s205, 63
      %s207 = scalar_select %p206, %s205, 63
      %s208 = smul.addr %s207, 8
      %s209 = scalar_lea.vmem %s0, %s208
      %s210 = smul.u32 32, %s15
      %s211 = smul.u32 32, %s15
      %p212 = scmp.lt.s32.totalorder %s211, 63
      %s213 = scalar_select %p212, %s211, 63
      %s214 = smul.addr %s213, 4
      %s215 = scalar_lea.vmem %s1, %s214
      %s216 = smul.u32 32, %s15
      %s217 = smul.u32 32, %s15
      %p218 = scmp.lt.s32.totalorder %s217, 63
      %s219 = scalar_select %p218, %s217, 63
      %s220 = smul.addr %s219, 8
      %s221 = scalar_lea.vmem %s4, %s220
      %s222 = smul.u32 32, %s15
      %v224 = vld [vmem:[%s215] sm:$0xf]
      %v225 = vld [vmem:[%s215 + $0x4] sm:$0xf]
      %v226 = vld [vmem:[%s215 + $0x8] sm:$0xf]
      %v227 = vld [vmem:[%s215 + $0xc] sm:$0xf]
      %v228 = vld [vmem:[%s215 + $0x10] sm:$0xf]
      %v229 = vld [vmem:[%s215 + $0x14] sm:$0xf]
      %v230 = vld [vmem:[%s215 + $0x18] sm:$0xf]
      %v231 = vld [vmem:[%s215 + $0x1c] sm:$0xf]
      %v232 = vld [vmem:[%s215 + $0x20] sm:$0xf]
      %v233 = vld [vmem:[%s215 + $0x24] sm:$0xf]
      %v234 = vld [vmem:[%s215 + $0x28] sm:$0xf]
      %v235 = vld [vmem:[%s215 + $0x2c] sm:$0xf]
      %v236 = vld [vmem:[%s215 + $0x30] sm:$0xf]
      %v237 = vld [vmem:[%s215 + $0x34] sm:$0xf]
      %v238 = vld [vmem:[%s215 + $0x38] sm:$0xf]
      %v239 = vld [vmem:[%s215 + $0x3c] sm:$0xf]
      %v240 = vld [vmem:[%s215 + $0x40] sm:$0xf]
      %v241 = vld [vmem:[%s215 + $0x44] sm:$0xf]
      %v242 = vld [vmem:[%s215 + $0x48] sm:$0xf]
      %v243 = vld [vmem:[%s215 + $0x4c] sm:$0xf]
      %v244 = vld [vmem:[%s215 + $0x50] sm:$0xf]
      %v245 = vld [vmem:[%s215 + $0x54] sm:$0xf]
      %v246 = vld [vmem:[%s215 + $0x58] sm:$0xf]
      %v247 = vld [vmem:[%s215 + $0x5c] sm:$0xf]
      %v248 = vld [vmem:[%s215 + $0x60] sm:$0xf]
      %v249 = vld [vmem:[%s215 + $0x64] sm:$0xf]
      %v250 = vld [vmem:[%s215 + $0x68] sm:$0xf]
      %v251 = vld [vmem:[%s215 + $0x6c] sm:$0xf]
      %v252 = vld [vmem:[%s215 + $0x70] sm:$0xf]
      %v253 = vld [vmem:[%s215 + $0x74] sm:$0xf]
      %v254 = vld [vmem:[%s215 + $0x78] sm:$0xf]
      %v255 = vld [vmem:[%s215 + $0x7c] sm:$0xf]
      %v256 = vld [vmem:[%s2] sm:$0xff]
      %v257 = vld [vmem:[%s2 + $0x8] sm:$0xf]
      %v258 = vld [vmem:[%s2 + $0xc] sm:$0xff]
      %v259 = vld [vmem:[%s2 + $0x14] sm:$0xf]
      %v260 = vld [vmem:[%s3] sm:$0x7]
      %v262 = vperm.slane %v260, 0
      %v263 = vperm.slane %v260, 1
      %v264 = vperm.slane %v260, 2
      %v300 = vunpack.c.l.b16 %v224
      %v301 = vunpack.c.l.b16 %v225
      %v302 = vunpack.c.l.b16 %v226
      %v303 = vunpack.c.l.b16 %v227
      %v304 = vunpack.c.l.b16 %v228
      %v305 = vunpack.c.l.b16 %v229
      %v306 = vunpack.c.l.b16 %v230
      %v307 = vunpack.c.l.b16 %v231
      %v308 = vunpack.c.l.b16 %v232
      %v309 = vunpack.c.l.b16 %v233
      %v310 = vunpack.c.l.b16 %v234
      %v311 = vunpack.c.l.b16 %v235
      %v312 = vunpack.c.l.b16 %v236
      %v313 = vunpack.c.l.b16 %v237
      %v314 = vunpack.c.l.b16 %v238
      %v315 = vunpack.c.l.b16 %v239
      %v316 = vunpack.c.l.b16 %v240
      %v317 = vunpack.c.l.b16 %v241
      %v318 = vunpack.c.l.b16 %v242
      %v319 = vunpack.c.l.b16 %v243
      %v320 = vunpack.c.l.b16 %v244
      %v321 = vunpack.c.l.b16 %v245
      %v322 = vunpack.c.l.b16 %v246
      %v323 = vunpack.c.l.b16 %v247
      %v324 = vunpack.c.l.b16 %v248
      %v325 = vunpack.c.l.b16 %v249
      %v326 = vunpack.c.l.b16 %v250
      %v327 = vunpack.c.l.b16 %v251
      %v328 = vunpack.c.l.b16 %v252
      %v329 = vunpack.c.l.b16 %v253
      %v330 = vunpack.c.l.b16 %v254
      %v331 = vunpack.c.l.b16 %v255
      %v332 = vpack.c.b16 %v301, %v300
      %v333 = vpack.c.b16 %v303, %v302
      %v334 = vpack.c.b16 %v305, %v304
      %v335 = vpack.c.b16 %v307, %v306
      %v336 = vpack.c.b16 %v309, %v308
      %v337 = vpack.c.b16 %v311, %v310
      %v338 = vpack.c.b16 %v313, %v312
      %v339 = vpack.c.b16 %v315, %v314
      %v340 = vpack.c.b16 %v317, %v316
      %v341 = vpack.c.b16 %v319, %v318
      %v342 = vpack.c.b16 %v321, %v320
      %v343 = vpack.c.b16 %v323, %v322
      %v344 = vpack.c.b16 %v325, %v324
      %v345 = vpack.c.b16 %v327, %v326
      %v346 = vpack.c.b16 %v329, %v328
      %v347 = vpack.c.b16 %v331, %v330
      %v352 = vunpack.c.l.b16 %v256
      %v353 = vunpack.c.h.b16 %v256
      %v354 = vunpack.c.l.b16 %v257
      %v355 = vunpack.c.l.b16 %v258
      %v356 = vunpack.c.h.b16 %v258
      %v357 = vunpack.c.l.b16 %v259
      %v358 = vpack.c.b16 %v355, %v352
      %v359 = vpack.c.b16 %v356, %v353
      %v360 = vpack.c.b16 %v357, %v354
      %vm364 = vcmask 130048
      %v366 = vsel %vm364, %v332, 0
      %v369 = vsel %vm364, %v333, 0
      %v372 = vsel %vm364, %v334, 0
      %v375 = vsel %vm364, %v335, 0
      %v378 = vsel %vm364, %v336, 0
      %v381 = vsel %vm364, %v337, 0
      %v384 = vsel %vm364, %v338, 0
      %v387 = vsel %vm364, %v339, 0
      %v390 = vsel %vm364, %v340, 0
      %v393 = vsel %vm364, %v341, 0
      %v396 = vsel %vm364, %v342, 0
      %v399 = vsel %vm364, %v343, 0
      %v402 = vsel %vm364, %v344, 0
      %v405 = vsel %vm364, %v345, 0
      %v408 = vsel %vm364, %v346, 0
      %v411 = vsel %vm364, %v347, 0
      %413 = vmatpush.bf16.msra.mxu0 0
      %414 = vmatpush.bf16.msra.mxu0 0
      %415 = vmatpush.bf16.msra.mxu0 0
      %416 = vmatpush.bf16.msra.mxu0 0
      %417 = vmatpush.bf16.msra.mxu0 0
      %418 = vmatpush.bf16.msra.mxu0 0
      %419 = vmatpush.bf16.msra.mxu0 0
      %420 = vmatpush.bf16.msra.mxu0 %v358
      %421 = vmatmul.bf16.gmra.mxu0 %v366
      %v422 = vpop.f32.mrf.mxu0
      %v423 = vadd.f32 %v262, %v422
      %v424 = vpop.f32.mrf.mxu0
      %v425 = vadd.f32 %v262, %v424
      %426 = vmatmul.bf16.gmra.mxu0 %v369
      %v427 = vpop.f32.mrf.mxu0
      %v428 = vadd.f32 %v262, %v427
      %v429 = vpop.f32.mrf.mxu0
      %v430 = vadd.f32 %v262, %v429
      %431 = vmatmul.bf16.gmra.mxu0 %v372
      %v432 = vpop.f32.mrf.mxu0
      %v433 = vadd.f32 %v262, %v432
      %v434 = vpop.f32.mrf.mxu0
      %v435 = vadd.f32 %v262, %v434
      %436 = vmatmul.bf16.gmra.mxu0 %v375
      %v437 = vpop.f32.mrf.mxu0
      %v438 = vadd.f32 %v262, %v437
      %v439 = vpop.f32.mrf.mxu0
      %v440 = vadd.f32 %v262, %v439
      %441 = vmatmul.bf16.gmra.mxu0 %v378
      %v442 = vpop.f32.mrf.mxu0
      %v443 = vadd.f32 %v262, %v442
      %v444 = vpop.f32.mrf.mxu0
      %v445 = vadd.f32 %v262, %v444
      %446 = vmatmul.bf16.gmra.mxu0 %v381
      %v447 = vpop.f32.mrf.mxu0
      %v448 = vadd.f32 %v262, %v447
      %v449 = vpop.f32.mrf.mxu0
      %v450 = vadd.f32 %v262, %v449
      %451 = vmatmul.bf16.gmra.mxu0 %v384
      %v452 = vpop.f32.mrf.mxu0
      %v453 = vadd.f32 %v262, %v452
      %v454 = vpop.f32.mrf.mxu0
      %v455 = vadd.f32 %v262, %v454
      %456 = vmatmul.bf16.gmra.mxu0 %v387
      %v457 = vpop.f32.mrf.mxu0
      %v458 = vadd.f32 %v262, %v457
      %v459 = vpop.f32.mrf.mxu0
      %v460 = vadd.f32 %v262, %v459
      %461 = vmatmul.bf16.gmra.mxu0 %v390
      %v462 = vpop.f32.mrf.mxu0
      %v463 = vadd.f32 %v262, %v462
      %v464 = vpop.f32.mrf.mxu0
      %v465 = vadd.f32 %v262, %v464
      %466 = vmatmul.bf16.gmra.mxu0 %v393
      %v467 = vpop.f32.mrf.mxu0
      %v468 = vadd.f32 %v262, %v467
      %v469 = vpop.f32.mrf.mxu0
      %v470 = vadd.f32 %v262, %v469
      %471 = vmatmul.bf16.gmra.mxu0 %v396
      %v472 = vpop.f32.mrf.mxu0
      %v473 = vadd.f32 %v262, %v472
      %v474 = vpop.f32.mrf.mxu0
      %v475 = vadd.f32 %v262, %v474
      %476 = vmatmul.bf16.gmra.mxu0 %v399
      %v477 = vpop.f32.mrf.mxu0
      %v478 = vadd.f32 %v262, %v477
      %v479 = vpop.f32.mrf.mxu0
      %v480 = vadd.f32 %v262, %v479
      %481 = vmatmul.bf16.gmra.mxu0 %v402
      %v482 = vpop.f32.mrf.mxu0
      %v483 = vadd.f32 %v262, %v482
      %v484 = vpop.f32.mrf.mxu0
      %v485 = vadd.f32 %v262, %v484
      %486 = vmatmul.bf16.gmra.mxu0 %v405
      %v487 = vpop.f32.mrf.mxu0
      %v488 = vadd.f32 %v262, %v487
      %v489 = vpop.f32.mrf.mxu0
      %v490 = vadd.f32 %v262, %v489
      %491 = vmatmul.bf16.gmra.mxu0 %v408
      %v492 = vpop.f32.mrf.mxu0
      %v493 = vadd.f32 %v262, %v492
      %v494 = vpop.f32.mrf.mxu0
      %v495 = vadd.f32 %v262, %v494
      %496 = vmatmul.bf16.gmra.mxu0 %v411
      %v497 = vpop.f32.mrf.mxu0
      %v498 = vadd.f32 %v262, %v497
      %v499 = vpop.f32.mrf.mxu0
      %v500 = vadd.f32 %v262, %v499
      %501 = vdwg.mxu0
      %502 = vmatpush.bf16.msra.mxu0 0
      %503 = vmatpush.bf16.msra.mxu0 0
      %504 = vmatpush.bf16.msra.mxu0 0
      %505 = vmatpush.bf16.msra.mxu0 0
      %506 = vmatpush.bf16.msra.mxu0 0
      %507 = vmatpush.bf16.msra.mxu0 0
      %508 = vmatpush.bf16.msra.mxu0 0
      %509 = vmatpush.bf16.msra.mxu0 %v359
      %510 = vmatmul.bf16.gmra.mxu0 %v366
      %v511 = vpop.f32.mrf.mxu0
      %v512 = vadd.f32 %v263, %v511
      %v513 = vpop.f32.mrf.mxu0
      %v514 = vadd.f32 %v263, %v513
      %515 = vmatmul.bf16.gmra.mxu0 %v369
      %v516 = vpop.f32.mrf.mxu0
      %v517 = vadd.f32 %v263, %v516
      %v518 = vpop.f32.mrf.mxu0
      %v519 = vadd.f32 %v263, %v518
      %520 = vmatmul.bf16.gmra.mxu0 %v372
      %v521 = vpop.f32.mrf.mxu0
      %v522 = vadd.f32 %v263, %v521
      %v523 = vpop.f32.mrf.mxu0
      %v524 = vadd.f32 %v263, %v523
      %525 = vmatmul.bf16.gmra.mxu0 %v375
      %v526 = vpop.f32.mrf.mxu0
      %v527 = vadd.f32 %v263, %v526
      %v528 = vpop.f32.mrf.mxu0
      %v529 = vadd.f32 %v263, %v528
      %530 = vmatmul.bf16.gmra.mxu0 %v378
      %v531 = vpop.f32.mrf.mxu0
      %v532 = vadd.f32 %v263, %v531
      %v533 = vpop.f32.mrf.mxu0
      %v534 = vadd.f32 %v263, %v533
      %535 = vmatmul.bf16.gmra.mxu0 %v381
      %v536 = vpop.f32.mrf.mxu0
      %v537 = vadd.f32 %v263, %v536
      %v538 = vpop.f32.mrf.mxu0
      %v539 = vadd.f32 %v263, %v538
      %540 = vmatmul.bf16.gmra.mxu0 %v384
      %v541 = vpop.f32.mrf.mxu0
      %v542 = vadd.f32 %v263, %v541
      %v543 = vpop.f32.mrf.mxu0
      %v544 = vadd.f32 %v263, %v543
      %545 = vmatmul.bf16.gmra.mxu0 %v387
      %v546 = vpop.f32.mrf.mxu0
      %v547 = vadd.f32 %v263, %v546
      %v548 = vpop.f32.mrf.mxu0
      %v549 = vadd.f32 %v263, %v548
      %550 = vmatmul.bf16.gmra.mxu0 %v390
      %v551 = vpop.f32.mrf.mxu0
      %v552 = vadd.f32 %v263, %v551
      %v553 = vpop.f32.mrf.mxu0
      %v554 = vadd.f32 %v263, %v553
      %555 = vmatmul.bf16.gmra.mxu0 %v393
      %v556 = vpop.f32.mrf.mxu0
      %v557 = vadd.f32 %v263, %v556
      %v558 = vpop.f32.mrf.mxu0
      %v559 = vadd.f32 %v263, %v558
      %560 = vmatmul.bf16.gmra.mxu0 %v396
      %v561 = vpop.f32.mrf.mxu0
      %v562 = vadd.f32 %v263, %v561
      %v563 = vpop.f32.mrf.mxu0
      %v564 = vadd.f32 %v263, %v563
      %565 = vmatmul.bf16.gmra.mxu0 %v399
      %v566 = vpop.f32.mrf.mxu0
      %v567 = vadd.f32 %v263, %v566
      %v568 = vpop.f32.mrf.mxu0
      %v569 = vadd.f32 %v263, %v568
      %570 = vmatmul.bf16.gmra.mxu0 %v402
      %v571 = vpop.f32.mrf.mxu0
      %v572 = vadd.f32 %v263, %v571
      %v573 = vpop.f32.mrf.mxu0
      %v574 = vadd.f32 %v263, %v573
      %575 = vmatmul.bf16.gmra.mxu0 %v405
      %v576 = vpop.f32.mrf.mxu0
      %v577 = vadd.f32 %v263, %v576
      %v578 = vpop.f32.mrf.mxu0
      %v579 = vadd.f32 %v263, %v578
      %580 = vmatmul.bf16.gmra.mxu0 %v408
      %v581 = vpop.f32.mrf.mxu0
      %v582 = vadd.f32 %v263, %v581
      %v583 = vpop.f32.mrf.mxu0
      %v584 = vadd.f32 %v263, %v583
      %585 = vmatmul.bf16.gmra.mxu0 %v411
      %v586 = vpop.f32.mrf.mxu0
      %v587 = vadd.f32 %v263, %v586
      %v588 = vpop.f32.mrf.mxu0
      %v589 = vadd.f32 %v263, %v588
      %590 = vdwg.mxu0
      %591 = vmatpush.bf16.msra.mxu0 0
      %592 = vmatpush.bf16.msra.mxu0 0
      %593 = vmatpush.bf16.msra.mxu0 0
      %594 = vmatpush.bf16.msra.mxu0 0
      %595 = vmatpush.bf16.msra.mxu0 0
      %596 = vmatpush.bf16.msra.mxu0 0
      %597 = vmatpush.bf16.msra.mxu0 0
      %598 = vmatpush.bf16.msra.mxu0 %v360
      %599 = vmatmul.bf16.gmra.mxu0 %v366
      %v600 = vpop.f32.mrf.mxu0
      %v601 = vadd.f32 %v264, %v600
      %v602 = vpop.f32.mrf.mxu0
      %v603 = vadd.f32 %v264, %v602
      %604 = vmatmul.bf16.gmra.mxu0 %v369
      %v605 = vpop.f32.mrf.mxu0
      %v606 = vadd.f32 %v264, %v605
      %v607 = vpop.f32.mrf.mxu0
      %v608 = vadd.f32 %v264, %v607
      %609 = vmatmul.bf16.gmra.mxu0 %v372
      %v610 = vpop.f32.mrf.mxu0
      %v611 = vadd.f32 %v264, %v610
      %v612 = vpop.f32.mrf.mxu0
      %v613 = vadd.f32 %v264, %v612
      %614 = vmatmul.bf16.gmra.mxu0 %v375
      %v615 = vpop.f32.mrf.mxu0
      %v616 = vadd.f32 %v264, %v615
      %v617 = vpop.f32.mrf.mxu0
      %v618 = vadd.f32 %v264, %v617
      %619 = vmatmul.bf16.gmra.mxu0 %v378
      %v620 = vpop.f32.mrf.mxu0
      %v621 = vadd.f32 %v264, %v620
      %v622 = vpop.f32.mrf.mxu0
      %v623 = vadd.f32 %v264, %v622
      %624 = vmatmul.bf16.gmra.mxu0 %v381
      %v625 = vpop.f32.mrf.mxu0
      %v626 = vadd.f32 %v264, %v625
      %v627 = vpop.f32.mrf.mxu0
      %v628 = vadd.f32 %v264, %v627
      %629 = vmatmul.bf16.gmra.mxu0 %v384
      %v630 = vpop.f32.mrf.mxu0
      %v631 = vadd.f32 %v264, %v630
      %v632 = vpop.f32.mrf.mxu0
      %v633 = vadd.f32 %v264, %v632
      %634 = vmatmul.bf16.gmra.mxu0 %v387
      %v635 = vpop.f32.mrf.mxu0
      %v636 = vadd.f32 %v264, %v635
      %v637 = vpop.f32.mrf.mxu0
      %v638 = vadd.f32 %v264, %v637
      %639 = vmatmul.bf16.gmra.mxu0 %v390
      %v640 = vpop.f32.mrf.mxu0
      %v641 = vadd.f32 %v264, %v640
      %v642 = vpop.f32.mrf.mxu0
      %v643 = vadd.f32 %v264, %v642
      %644 = vmatmul.bf16.gmra.mxu0 %v393
      %v645 = vpop.f32.mrf.mxu0
      %v646 = vadd.f32 %v264, %v645
      %v647 = vpop.f32.mrf.mxu0
      %v648 = vadd.f32 %v264, %v647
      %649 = vmatmul.bf16.gmra.mxu0 %v396
      %v650 = vpop.f32.mrf.mxu0
      %v651 = vadd.f32 %v264, %v650
      %v652 = vpop.f32.mrf.mxu0
      %v653 = vadd.f32 %v264, %v652
      %654 = vmatmul.bf16.gmra.mxu0 %v399
      %v655 = vpop.f32.mrf.mxu0
      %v656 = vadd.f32 %v264, %v655
      %v657 = vpop.f32.mrf.mxu0
      %v658 = vadd.f32 %v264, %v657
      %659 = vmatmul.bf16.gmra.mxu0 %v402
      %v660 = vpop.f32.mrf.mxu0
      %v661 = vadd.f32 %v264, %v660
      %v662 = vpop.f32.mrf.mxu0
      %v663 = vadd.f32 %v264, %v662
      %664 = vmatmul.bf16.gmra.mxu0 %v405
      %v665 = vpop.f32.mrf.mxu0
      %v666 = vadd.f32 %v264, %v665
      %v667 = vpop.f32.mrf.mxu0
      %v668 = vadd.f32 %v264, %v667
      %669 = vmatmul.bf16.gmra.mxu0 %v408
      %v670 = vpop.f32.mrf.mxu0
      %v671 = vadd.f32 %v264, %v670
      %v672 = vpop.f32.mrf.mxu0
      %v673 = vadd.f32 %v264, %v672
      %674 = vmatmul.bf16.gmra.mxu0 %v411
      %v675 = vpop.f32.mrf.mxu0
      %v676 = vadd.f32 %v264, %v675
      %v677 = vpop.f32.mrf.mxu0
      %v678 = vadd.f32 %v264, %v677
      %679 = vdwg.mxu0
      %v680 = vld [vmem:[%s209] sm:$0xff]
      %v681 = vld [vmem:[%s209 + $0x8] sm:$0xff]
      %v682 = vld [vmem:[%s209 + $0x10] sm:$0xff]
      %v683 = vld [vmem:[%s209 + $0x18] sm:$0xff]
      %v684 = vld [vmem:[%s209 + $0x20] sm:$0xff]
      %v685 = vld [vmem:[%s209 + $0x28] sm:$0xff]
      %v686 = vld [vmem:[%s209 + $0x30] sm:$0xff]
      %v687 = vld [vmem:[%s209 + $0x38] sm:$0xff]
      %v688 = vld [vmem:[%s209 + $0x40] sm:$0xff]
      %v689 = vld [vmem:[%s209 + $0x48] sm:$0xff]
      %v690 = vld [vmem:[%s209 + $0x50] sm:$0xff]
      %v691 = vld [vmem:[%s209 + $0x58] sm:$0xff]
      %v692 = vld [vmem:[%s209 + $0x60] sm:$0xff]
      %v693 = vld [vmem:[%s209 + $0x68] sm:$0xff]
      %v694 = vld [vmem:[%s209 + $0x70] sm:$0xff]
      %v695 = vld [vmem:[%s209 + $0x78] sm:$0xff]
      %v696 = vld [vmem:[%s209 + $0x80] sm:$0xff]
      %v697 = vld [vmem:[%s209 + $0x88] sm:$0xff]
      %v698 = vld [vmem:[%s209 + $0x90] sm:$0xff]
      %v699 = vld [vmem:[%s209 + $0x98] sm:$0xff]
      %v700 = vld [vmem:[%s209 + $0xa0] sm:$0xff]
      %v701 = vld [vmem:[%s209 + $0xa8] sm:$0xff]
      %v702 = vld [vmem:[%s209 + $0xb0] sm:$0xff]
      %v703 = vld [vmem:[%s209 + $0xb8] sm:$0xff]
      %v704 = vld [vmem:[%s209 + $0xc0] sm:$0xff]
      %v705 = vld [vmem:[%s209 + $0xc8] sm:$0xff]
      %v706 = vld [vmem:[%s209 + $0xd0] sm:$0xff]
      %v707 = vld [vmem:[%s209 + $0xd8] sm:$0xff]
      %v708 = vld [vmem:[%s209 + $0xe0] sm:$0xff]
      %v709 = vld [vmem:[%s209 + $0xe8] sm:$0xff]
      %v710 = vld [vmem:[%s209 + $0xf0] sm:$0xff]
      %v711 = vld [vmem:[%s209 + $0xf8] sm:$0xff]
      %vm712 = vcmp.eq.s32.totalorder %v680, 0
      %vm713 = vcmp.eq.s32.totalorder %v681, 0
      %vm714 = vcmp.eq.s32.totalorder %v682, 0
      %vm715 = vcmp.eq.s32.totalorder %v683, 0
      %vm716 = vcmp.eq.s32.totalorder %v684, 0
      %vm717 = vcmp.eq.s32.totalorder %v685, 0
      %vm718 = vcmp.eq.s32.totalorder %v686, 0
      %vm719 = vcmp.eq.s32.totalorder %v687, 0
      %vm720 = vcmp.eq.s32.totalorder %v688, 0
      %vm721 = vcmp.eq.s32.totalorder %v689, 0
      %vm722 = vcmp.eq.s32.totalorder %v690, 0
      %vm723 = vcmp.eq.s32.totalorder %v691, 0
      %vm724 = vcmp.eq.s32.totalorder %v692, 0
      %vm725 = vcmp.eq.s32.totalorder %v693, 0
      %vm726 = vcmp.eq.s32.totalorder %v694, 0
      %vm727 = vcmp.eq.s32.totalorder %v695, 0
      %vm728 = vcmp.eq.s32.totalorder %v696, 0
      %vm729 = vcmp.eq.s32.totalorder %v697, 0
      %vm730 = vcmp.eq.s32.totalorder %v698, 0
      %vm731 = vcmp.eq.s32.totalorder %v699, 0
      %vm732 = vcmp.eq.s32.totalorder %v700, 0
      %vm733 = vcmp.eq.s32.totalorder %v701, 0
      %vm734 = vcmp.eq.s32.totalorder %v702, 0
      %vm735 = vcmp.eq.s32.totalorder %v703, 0
      %vm736 = vcmp.eq.s32.totalorder %v704, 0
      %vm737 = vcmp.eq.s32.totalorder %v705, 0
      %vm738 = vcmp.eq.s32.totalorder %v706, 0
      %vm739 = vcmp.eq.s32.totalorder %v707, 0
      %vm740 = vcmp.eq.s32.totalorder %v708, 0
      %vm741 = vcmp.eq.s32.totalorder %v709, 0
      %vm742 = vcmp.eq.s32.totalorder %v710, 0
      %vm743 = vcmp.eq.s32.totalorder %v711, 0
      %v744 = vsel %vm712, 1, 0
      %v745 = vsel %vm713, 1, 0
      %v746 = vsel %vm714, 1, 0
      %v747 = vsel %vm715, 1, 0
      %v748 = vsel %vm716, 1, 0
      %v749 = vsel %vm717, 1, 0
      %v750 = vsel %vm718, 1, 0
      %v751 = vsel %vm719, 1, 0
      %v752 = vsel %vm720, 1, 0
      %v753 = vsel %vm721, 1, 0
      %v754 = vsel %vm722, 1, 0
      %v755 = vsel %vm723, 1, 0
      %v756 = vsel %vm724, 1, 0
      %v757 = vsel %vm725, 1, 0
      %v758 = vsel %vm726, 1, 0
      %v759 = vsel %vm727, 1, 0
      %v760 = vsel %vm728, 1, 0
      %v761 = vsel %vm729, 1, 0
      %v762 = vsel %vm730, 1, 0
      %v763 = vsel %vm731, 1, 0
      %v764 = vsel %vm732, 1, 0
      %v765 = vsel %vm733, 1, 0
      %v766 = vsel %vm734, 1, 0
      %v767 = vsel %vm735, 1, 0
      %v768 = vsel %vm736, 1, 0
      %v769 = vsel %vm737, 1, 0
      %v770 = vsel %vm738, 1, 0
      %v771 = vsel %vm739, 1, 0
      %v772 = vsel %vm740, 1, 0
      %v773 = vsel %vm741, 1, 0
      %v774 = vsel %vm742, 1, 0
      %v775 = vsel %vm743, 1, 0
      %776 = vset.pattern.permute.xlu0 0
      %777 = vperm.xlu0 %776, %v744
      %v778 = vpop.permute.xlu0 %777
      %779 = vset.pattern.permute.xlu0 0
      %780 = vperm.xlu0 %779, %v745
      %v781 = vpop.permute.xlu0 %780
      %782 = vset.pattern.permute.xlu0 0
      %783 = vperm.xlu0 %782, %v746
      %v784 = vpop.permute.xlu0 %783
      %785 = vset.pattern.permute.xlu0 0
      %786 = vperm.xlu0 %785, %v747
      %v787 = vpop.permute.xlu0 %786
      %788 = vset.pattern.permute.xlu0 0
      %789 = vperm.xlu0 %788, %v748
      %v790 = vpop.permute.xlu0 %789
      %791 = vset.pattern.permute.xlu0 0
      %792 = vperm.xlu0 %791, %v749
      %v793 = vpop.permute.xlu0 %792
      %794 = vset.pattern.permute.xlu0 0
      %795 = vperm.xlu0 %794, %v750
      %v796 = vpop.permute.xlu0 %795
      %797 = vset.pattern.permute.xlu0 0
      %798 = vperm.xlu0 %797, %v751
      %v799 = vpop.permute.xlu0 %798
      %800 = vset.pattern.permute.xlu0 0
      %801 = vperm.xlu0 %800, %v752
      %v802 = vpop.permute.xlu0 %801
      %803 = vset.pattern.permute.xlu0 0
      %804 = vperm.xlu0 %803, %v753
      %v805 = vpop.permute.xlu0 %804
      %806 = vset.pattern.permute.xlu0 0
      %807 = vperm.xlu0 %806, %v754
      %v808 = vpop.permute.xlu0 %807
      %809 = vset.pattern.permute.xlu0 0
      %810 = vperm.xlu0 %809, %v755
      %v811 = vpop.permute.xlu0 %810
      %812 = vset.pattern.permute.xlu0 0
      %813 = vperm.xlu0 %812, %v756
      %v814 = vpop.permute.xlu0 %813
      %815 = vset.pattern.permute.xlu0 0
      %816 = vperm.xlu0 %815, %v757
      %v817 = vpop.permute.xlu0 %816
      %818 = vset.pattern.permute.xlu0 0
      %819 = vperm.xlu0 %818, %v758
      %v820 = vpop.permute.xlu0 %819
      %821 = vset.pattern.permute.xlu0 0
      %822 = vperm.xlu0 %821, %v759
      %v823 = vpop.permute.xlu0 %822
      %824 = vset.pattern.permute.xlu0 0
      %825 = vperm.xlu0 %824, %v760
      %v826 = vpop.permute.xlu0 %825
      %827 = vset.pattern.permute.xlu0 0
      %828 = vperm.xlu0 %827, %v761
      %v829 = vpop.permute.xlu0 %828
      %830 = vset.pattern.permute.xlu0 0
      %831 = vperm.xlu0 %830, %v762
      %v832 = vpop.permute.xlu0 %831
      %833 = vset.pattern.permute.xlu0 0
      %834 = vperm.xlu0 %833, %v763
      %v835 = vpop.permute.xlu0 %834
      %836 = vset.pattern.permute.xlu0 0
      %837 = vperm.xlu0 %836, %v764
      %v838 = vpop.permute.xlu0 %837
      %839 = vset.pattern.permute.xlu0 0
      %840 = vperm.xlu0 %839, %v765
      %v841 = vpop.permute.xlu0 %840
      %842 = vset.pattern.permute.xlu0 0
      %843 = vperm.xlu0 %842, %v766
      %v844 = vpop.permute.xlu0 %843
      %845 = vset.pattern.permute.xlu0 0
      %846 = vperm.xlu0 %845, %v767
      %v847 = vpop.permute.xlu0 %846
      %848 = vset.pattern.permute.xlu0 0
      %849 = vperm.xlu0 %848, %v768
      %v850 = vpop.permute.xlu0 %849
      %851 = vset.pattern.permute.xlu0 0
      %852 = vperm.xlu0 %851, %v769
      %v853 = vpop.permute.xlu0 %852
      %854 = vset.pattern.permute.xlu0 0
      %855 = vperm.xlu0 %854, %v770
      %v856 = vpop.permute.xlu0 %855
      %857 = vset.pattern.permute.xlu0 0
      %858 = vperm.xlu0 %857, %v771
      %v859 = vpop.permute.xlu0 %858
      %860 = vset.pattern.permute.xlu0 0
      %861 = vperm.xlu0 %860, %v772
      %v862 = vpop.permute.xlu0 %861
      %863 = vset.pattern.permute.xlu0 0
      %864 = vperm.xlu0 %863, %v773
      %v865 = vpop.permute.xlu0 %864
      %866 = vset.pattern.permute.xlu0 0
      %867 = vperm.xlu0 %866, %v774
      %v868 = vpop.permute.xlu0 %867
      %869 = vset.pattern.permute.xlu0 0
      %870 = vperm.xlu0 %869, %v775
      %v871 = vpop.permute.xlu0 %870
      %vm872 = vcmp.eq.s32.totalorder %v778, 1
      %vm873 = vcmp.eq.s32.totalorder %v781, 1
      %vm874 = vcmp.eq.s32.totalorder %v784, 1
      %vm875 = vcmp.eq.s32.totalorder %v787, 1
      %vm876 = vcmp.eq.s32.totalorder %v790, 1
      %vm877 = vcmp.eq.s32.totalorder %v793, 1
      %vm878 = vcmp.eq.s32.totalorder %v796, 1
      %vm879 = vcmp.eq.s32.totalorder %v799, 1
      %vm880 = vcmp.eq.s32.totalorder %v802, 1
      %vm881 = vcmp.eq.s32.totalorder %v805, 1
      %vm882 = vcmp.eq.s32.totalorder %v808, 1
      %vm883 = vcmp.eq.s32.totalorder %v811, 1
      %vm884 = vcmp.eq.s32.totalorder %v814, 1
      %vm885 = vcmp.eq.s32.totalorder %v817, 1
      %vm886 = vcmp.eq.s32.totalorder %v820, 1
      %vm887 = vcmp.eq.s32.totalorder %v823, 1
      %vm888 = vcmp.eq.s32.totalorder %v826, 1
      %vm889 = vcmp.eq.s32.totalorder %v829, 1
      %vm890 = vcmp.eq.s32.totalorder %v832, 1
      %vm891 = vcmp.eq.s32.totalorder %v835, 1
      %vm892 = vcmp.eq.s32.totalorder %v838, 1
      %vm893 = vcmp.eq.s32.totalorder %v841, 1
      %vm894 = vcmp.eq.s32.totalorder %v844, 1
      %vm895 = vcmp.eq.s32.totalorder %v847, 1
      %vm896 = vcmp.eq.s32.totalorder %v850, 1
      %vm897 = vcmp.eq.s32.totalorder %v853, 1
      %vm898 = vcmp.eq.s32.totalorder %v856, 1
      %vm899 = vcmp.eq.s32.totalorder %v859, 1
      %vm900 = vcmp.eq.s32.totalorder %v862, 1
      %vm901 = vcmp.eq.s32.totalorder %v865, 1
      %vm902 = vcmp.eq.s32.totalorder %v868, 1
      %vm903 = vcmp.eq.s32.totalorder %v871, 1
      %v904 = vsel %vm872, %v423, 0.0
      %v905 = vsel %vm873, %v425, 0.0
      %v906 = vsel %vm874, %v428, 0.0
      %v907 = vsel %vm875, %v430, 0.0
      %v908 = vsel %vm876, %v433, 0.0
      %v909 = vsel %vm877, %v435, 0.0
      %v910 = vsel %vm878, %v438, 0.0
      %v911 = vsel %vm879, %v440, 0.0
      %v912 = vsel %vm880, %v443, 0.0
      %v913 = vsel %vm881, %v445, 0.0
      %v914 = vsel %vm882, %v448, 0.0
      %v915 = vsel %vm883, %v450, 0.0
      %v916 = vsel %vm884, %v453, 0.0
      %v917 = vsel %vm885, %v455, 0.0
      %v918 = vsel %vm886, %v458, 0.0
      %v919 = vsel %vm887, %v460, 0.0
      %v920 = vsel %vm888, %v463, 0.0
      %v921 = vsel %vm889, %v465, 0.0
      %v922 = vsel %vm890, %v468, 0.0
      %v923 = vsel %vm891, %v470, 0.0
      %v924 = vsel %vm892, %v473, 0.0
      %v925 = vsel %vm893, %v475, 0.0
      %v926 = vsel %vm894, %v478, 0.0
      %v927 = vsel %vm895, %v480, 0.0
      %v928 = vsel %vm896, %v483, 0.0
      %v929 = vsel %vm897, %v485, 0.0
      %v930 = vsel %vm898, %v488, 0.0
      %v931 = vsel %vm899, %v490, 0.0
      %v932 = vsel %vm900, %v493, 0.0
      %v933 = vsel %vm901, %v495, 0.0
      %v934 = vsel %vm902, %v498, 0.0
      %v935 = vsel %vm903, %v500, 0.0
      %vm936 = vcmp.eq.s32.totalorder %v680, 1
      %vm937 = vcmp.eq.s32.totalorder %v681, 1
      %vm938 = vcmp.eq.s32.totalorder %v682, 1
      %vm939 = vcmp.eq.s32.totalorder %v683, 1
      %vm940 = vcmp.eq.s32.totalorder %v684, 1
      %vm941 = vcmp.eq.s32.totalorder %v685, 1
      %vm942 = vcmp.eq.s32.totalorder %v686, 1
      %vm943 = vcmp.eq.s32.totalorder %v687, 1
      %vm944 = vcmp.eq.s32.totalorder %v688, 1
      %vm945 = vcmp.eq.s32.totalorder %v689, 1
      %vm946 = vcmp.eq.s32.totalorder %v690, 1
      %vm947 = vcmp.eq.s32.totalorder %v691, 1
      %vm948 = vcmp.eq.s32.totalorder %v692, 1
      %vm949 = vcmp.eq.s32.totalorder %v693, 1
      %vm950 = vcmp.eq.s32.totalorder %v694, 1
      %vm951 = vcmp.eq.s32.totalorder %v695, 1
      %vm952 = vcmp.eq.s32.totalorder %v696, 1
      %vm953 = vcmp.eq.s32.totalorder %v697, 1
      %vm954 = vcmp.eq.s32.totalorder %v698, 1
      %vm955 = vcmp.eq.s32.totalorder %v699, 1
      %vm956 = vcmp.eq.s32.totalorder %v700, 1
      %vm957 = vcmp.eq.s32.totalorder %v701, 1
      %vm958 = vcmp.eq.s32.totalorder %v702, 1
      %vm959 = vcmp.eq.s32.totalorder %v703, 1
      %vm960 = vcmp.eq.s32.totalorder %v704, 1
      %vm961 = vcmp.eq.s32.totalorder %v705, 1
      %vm962 = vcmp.eq.s32.totalorder %v706, 1
      %vm963 = vcmp.eq.s32.totalorder %v707, 1
      %vm964 = vcmp.eq.s32.totalorder %v708, 1
      %vm965 = vcmp.eq.s32.totalorder %v709, 1
      %vm966 = vcmp.eq.s32.totalorder %v710, 1
      %vm967 = vcmp.eq.s32.totalorder %v711, 1
      %v968 = vsel %vm936, 1, 0
      %v969 = vsel %vm937, 1, 0
      %v970 = vsel %vm938, 1, 0
      %v971 = vsel %vm939, 1, 0
      %v972 = vsel %vm940, 1, 0
      %v973 = vsel %vm941, 1, 0
      %v974 = vsel %vm942, 1, 0
      %v975 = vsel %vm943, 1, 0
      %v976 = vsel %vm944, 1, 0
      %v977 = vsel %vm945, 1, 0
      %v978 = vsel %vm946, 1, 0
      %v979 = vsel %vm947, 1, 0
      %v980 = vsel %vm948, 1, 0
      %v981 = vsel %vm949, 1, 0
      %v982 = vsel %vm950, 1, 0
      %v983 = vsel %vm951, 1, 0
      %v984 = vsel %vm952, 1, 0
      %v985 = vsel %vm953, 1, 0
      %v986 = vsel %vm954, 1, 0
      %v987 = vsel %vm955, 1, 0
      %v988 = vsel %vm956, 1, 0
      %v989 = vsel %vm957, 1, 0
      %v990 = vsel %vm958, 1, 0
      %v991 = vsel %vm959, 1, 0
      %v992 = vsel %vm960, 1, 0
      %v993 = vsel %vm961, 1, 0
      %v994 = vsel %vm962, 1, 0
      %v995 = vsel %vm963, 1, 0
      %v996 = vsel %vm964, 1, 0
      %v997 = vsel %vm965, 1, 0
      %v998 = vsel %vm966, 1, 0
      %v999 = vsel %vm967, 1, 0
      %1000 = vset.pattern.permute.xlu0 0
      %1001 = vperm.xlu0 %1000, %v968
      %v1002 = vpop.permute.xlu0 %1001
      %1003 = vset.pattern.permute.xlu0 0
      %1004 = vperm.xlu0 %1003, %v969
      %v1005 = vpop.permute.xlu0 %1004
      %1006 = vset.pattern.permute.xlu0 0
      %1007 = vperm.xlu0 %1006, %v970
      %v1008 = vpop.permute.xlu0 %1007
      %1009 = vset.pattern.permute.xlu0 0
      %1010 = vperm.xlu0 %1009, %v971
      %v1011 = vpop.permute.xlu0 %1010
      %1012 = vset.pattern.permute.xlu0 0
      %1013 = vperm.xlu0 %1012, %v972
      %v1014 = vpop.permute.xlu0 %1013
      %1015 = vset.pattern.permute.xlu0 0
      %1016 = vperm.xlu0 %1015, %v973
      %v1017 = vpop.permute.xlu0 %1016
      %1018 = vset.pattern.permute.xlu0 0
      %1019 = vperm.xlu0 %1018, %v974
      %v1020 = vpop.permute.xlu0 %1019
      %1021 = vset.pattern.permute.xlu0 0
      %1022 = vperm.xlu0 %1021, %v975
      %v1023 = vpop.permute.xlu0 %1022
      %1024 = vset.pattern.permute.xlu0 0
      %1025 = vperm.xlu0 %1024, %v976
      %v1026 = vpop.permute.xlu0 %1025
      %1027 = vset.pattern.permute.xlu0 0
      %1028 = vperm.xlu0 %1027, %v977
      %v1029 = vpop.permute.xlu0 %1028
      %1030 = vset.pattern.permute.xlu0 0
      %1031 = vperm.xlu0 %1030, %v978
      %v1032 = vpop.permute.xlu0 %1031
      %1033 = vset.pattern.permute.xlu0 0
      %1034 = vperm.xlu0 %1033, %v979
      %v1035 = vpop.permute.xlu0 %1034
      %1036 = vset.pattern.permute.xlu0 0
      %1037 = vperm.xlu0 %1036, %v980
      %v1038 = vpop.permute.xlu0 %1037
      %1039 = vset.pattern.permute.xlu0 0
      %1040 = vperm.xlu0 %1039, %v981
      %v1041 = vpop.permute.xlu0 %1040
      %1042 = vset.pattern.permute.xlu0 0
      %1043 = vperm.xlu0 %1042, %v982
      %v1044 = vpop.permute.xlu0 %1043
      %1045 = vset.pattern.permute.xlu0 0
      %1046 = vperm.xlu0 %1045, %v983
      %v1047 = vpop.permute.xlu0 %1046
      %1048 = vset.pattern.permute.xlu0 0
      %1049 = vperm.xlu0 %1048, %v984
      %v1050 = vpop.permute.xlu0 %1049
      %1051 = vset.pattern.permute.xlu0 0
      %1052 = vperm.xlu0 %1051, %v985
      %v1053 = vpop.permute.xlu0 %1052
      %1054 = vset.pattern.permute.xlu0 0
      %1055 = vperm.xlu0 %1054, %v986
      %v1056 = vpop.permute.xlu0 %1055
      %1057 = vset.pattern.permute.xlu0 0
      %1058 = vperm.xlu0 %1057, %v987
      %v1059 = vpop.permute.xlu0 %1058
      %1060 = vset.pattern.permute.xlu0 0
      %1061 = vperm.xlu0 %1060, %v988
      %v1062 = vpop.permute.xlu0 %1061
      %1063 = vset.pattern.permute.xlu0 0
      %1064 = vperm.xlu0 %1063, %v989
      %v1065 = vpop.permute.xlu0 %1064
      %1066 = vset.pattern.permute.xlu0 0
      %1067 = vperm.xlu0 %1066, %v990
      %v1068 = vpop.permute.xlu0 %1067
      %1069 = vset.pattern.permute.xlu0 0
      %1070 = vperm.xlu0 %1069, %v991
      %v1071 = vpop.permute.xlu0 %1070
      %1072 = vset.pattern.permute.xlu0 0
      %1073 = vperm.xlu0 %1072, %v992
      %v1074 = vpop.permute.xlu0 %1073
      %1075 = vset.pattern.permute.xlu0 0
      %1076 = vperm.xlu0 %1075, %v993
      %v1077 = vpop.permute.xlu0 %1076
      %1078 = vset.pattern.permute.xlu0 0
      %1079 = vperm.xlu0 %1078, %v994
      %v1080 = vpop.permute.xlu0 %1079
      %1081 = vset.pattern.permute.xlu0 0
      %1082 = vperm.xlu0 %1081, %v995
      %v1083 = vpop.permute.xlu0 %1082
      %1084 = vset.pattern.permute.xlu0 0
      %1085 = vperm.xlu0 %1084, %v996
      %v1086 = vpop.permute.xlu0 %1085
      %1087 = vset.pattern.permute.xlu0 0
      %1088 = vperm.xlu0 %1087, %v997
      %v1089 = vpop.permute.xlu0 %1088
      %1090 = vset.pattern.permute.xlu0 0
      %1091 = vperm.xlu0 %1090, %v998
      %v1092 = vpop.permute.xlu0 %1091
      %1093 = vset.pattern.permute.xlu0 0
      %1094 = vperm.xlu0 %1093, %v999
      %v1095 = vpop.permute.xlu0 %1094
      %vm1096 = vcmp.eq.s32.totalorder %v1002, 1
      %vm1097 = vcmp.eq.s32.totalorder %v1005, 1
      %vm1098 = vcmp.eq.s32.totalorder %v1008, 1
      %vm1099 = vcmp.eq.s32.totalorder %v1011, 1
      %vm1100 = vcmp.eq.s32.totalorder %v1014, 1
      %vm1101 = vcmp.eq.s32.totalorder %v1017, 1
      %vm1102 = vcmp.eq.s32.totalorder %v1020, 1
      %vm1103 = vcmp.eq.s32.totalorder %v1023, 1
      %vm1104 = vcmp.eq.s32.totalorder %v1026, 1
      %vm1105 = vcmp.eq.s32.totalorder %v1029, 1
      %vm1106 = vcmp.eq.s32.totalorder %v1032, 1
      %vm1107 = vcmp.eq.s32.totalorder %v1035, 1
      %vm1108 = vcmp.eq.s32.totalorder %v1038, 1
      %vm1109 = vcmp.eq.s32.totalorder %v1041, 1
      %vm1110 = vcmp.eq.s32.totalorder %v1044, 1
      %vm1111 = vcmp.eq.s32.totalorder %v1047, 1
      %vm1112 = vcmp.eq.s32.totalorder %v1050, 1
      %vm1113 = vcmp.eq.s32.totalorder %v1053, 1
      %vm1114 = vcmp.eq.s32.totalorder %v1056, 1
      %vm1115 = vcmp.eq.s32.totalorder %v1059, 1
      %vm1116 = vcmp.eq.s32.totalorder %v1062, 1
      %vm1117 = vcmp.eq.s32.totalorder %v1065, 1
      %vm1118 = vcmp.eq.s32.totalorder %v1068, 1
      %vm1119 = vcmp.eq.s32.totalorder %v1071, 1
      %vm1120 = vcmp.eq.s32.totalorder %v1074, 1
      %vm1121 = vcmp.eq.s32.totalorder %v1077, 1
      %vm1122 = vcmp.eq.s32.totalorder %v1080, 1
      %vm1123 = vcmp.eq.s32.totalorder %v1083, 1
      %vm1124 = vcmp.eq.s32.totalorder %v1086, 1
      %vm1125 = vcmp.eq.s32.totalorder %v1089, 1
      %vm1126 = vcmp.eq.s32.totalorder %v1092, 1
      %vm1127 = vcmp.eq.s32.totalorder %v1095, 1
      %v1128 = vsel %vm1096, %v512, %v904
      %v1129 = vsel %vm1097, %v514, %v905
      %v1130 = vsel %vm1098, %v517, %v906
      %v1131 = vsel %vm1099, %v519, %v907
      %v1132 = vsel %vm1100, %v522, %v908
      %v1133 = vsel %vm1101, %v524, %v909
      %v1134 = vsel %vm1102, %v527, %v910
      %v1135 = vsel %vm1103, %v529, %v911
      %v1136 = vsel %vm1104, %v532, %v912
      %v1137 = vsel %vm1105, %v534, %v913
      %v1138 = vsel %vm1106, %v537, %v914
      %v1139 = vsel %vm1107, %v539, %v915
      %v1140 = vsel %vm1108, %v542, %v916
      %v1141 = vsel %vm1109, %v544, %v917
      %v1142 = vsel %vm1110, %v547, %v918
      %v1143 = vsel %vm1111, %v549, %v919
      %v1144 = vsel %vm1112, %v552, %v920
      %v1145 = vsel %vm1113, %v554, %v921
      %v1146 = vsel %vm1114, %v557, %v922
      %v1147 = vsel %vm1115, %v559, %v923
      %v1148 = vsel %vm1116, %v562, %v924
      %v1149 = vsel %vm1117, %v564, %v925
      %v1150 = vsel %vm1118, %v567, %v926
      %v1151 = vsel %vm1119, %v569, %v927
      %v1152 = vsel %vm1120, %v572, %v928
      %v1153 = vsel %vm1121, %v574, %v929
      %v1154 = vsel %vm1122, %v577, %v930
      %v1155 = vsel %vm1123, %v579, %v931
      %v1156 = vsel %vm1124, %v582, %v932
      %v1157 = vsel %vm1125, %v584, %v933
      %v1158 = vsel %vm1126, %v587, %v934
      %v1159 = vsel %vm1127, %v589, %v935
      %vm1160 = vcmp.eq.s32.totalorder %v680, 2
      %vm1161 = vcmp.eq.s32.totalorder %v681, 2
      %vm1162 = vcmp.eq.s32.totalorder %v682, 2
      %vm1163 = vcmp.eq.s32.totalorder %v683, 2
      %vm1164 = vcmp.eq.s32.totalorder %v684, 2
      %vm1165 = vcmp.eq.s32.totalorder %v685, 2
      %vm1166 = vcmp.eq.s32.totalorder %v686, 2
      %vm1167 = vcmp.eq.s32.totalorder %v687, 2
      %vm1168 = vcmp.eq.s32.totalorder %v688, 2
      %vm1169 = vcmp.eq.s32.totalorder %v689, 2
      %vm1170 = vcmp.eq.s32.totalorder %v690, 2
      %vm1171 = vcmp.eq.s32.totalorder %v691, 2
      %vm1172 = vcmp.eq.s32.totalorder %v692, 2
      %vm1173 = vcmp.eq.s32.totalorder %v693, 2
      %vm1174 = vcmp.eq.s32.totalorder %v694, 2
      %vm1175 = vcmp.eq.s32.totalorder %v695, 2
      %vm1176 = vcmp.eq.s32.totalorder %v696, 2
      %vm1177 = vcmp.eq.s32.totalorder %v697, 2
      %vm1178 = vcmp.eq.s32.totalorder %v698, 2
      %vm1179 = vcmp.eq.s32.totalorder %v699, 2
      %vm1180 = vcmp.eq.s32.totalorder %v700, 2
      %vm1181 = vcmp.eq.s32.totalorder %v701, 2
      %vm1182 = vcmp.eq.s32.totalorder %v702, 2
      %vm1183 = vcmp.eq.s32.totalorder %v703, 2
      %vm1184 = vcmp.eq.s32.totalorder %v704, 2
      %vm1185 = vcmp.eq.s32.totalorder %v705, 2
      %vm1186 = vcmp.eq.s32.totalorder %v706, 2
      %vm1187 = vcmp.eq.s32.totalorder %v707, 2
      %vm1188 = vcmp.eq.s32.totalorder %v708, 2
      %vm1189 = vcmp.eq.s32.totalorder %v709, 2
      %vm1190 = vcmp.eq.s32.totalorder %v710, 2
      %vm1191 = vcmp.eq.s32.totalorder %v711, 2
      %v1192 = vsel %vm1160, 1, 0
      %v1193 = vsel %vm1161, 1, 0
      %v1194 = vsel %vm1162, 1, 0
      %v1195 = vsel %vm1163, 1, 0
      %v1196 = vsel %vm1164, 1, 0
      %v1197 = vsel %vm1165, 1, 0
      %v1198 = vsel %vm1166, 1, 0
      %v1199 = vsel %vm1167, 1, 0
      %v1200 = vsel %vm1168, 1, 0
      %v1201 = vsel %vm1169, 1, 0
      %v1202 = vsel %vm1170, 1, 0
      %v1203 = vsel %vm1171, 1, 0
      %v1204 = vsel %vm1172, 1, 0
      %v1205 = vsel %vm1173, 1, 0
      %v1206 = vsel %vm1174, 1, 0
      %v1207 = vsel %vm1175, 1, 0
      %v1208 = vsel %vm1176, 1, 0
      %v1209 = vsel %vm1177, 1, 0
      %v1210 = vsel %vm1178, 1, 0
      %v1211 = vsel %vm1179, 1, 0
      %v1212 = vsel %vm1180, 1, 0
      %v1213 = vsel %vm1181, 1, 0
      %v1214 = vsel %vm1182, 1, 0
      %v1215 = vsel %vm1183, 1, 0
      %v1216 = vsel %vm1184, 1, 0
      %v1217 = vsel %vm1185, 1, 0
      %v1218 = vsel %vm1186, 1, 0
      %v1219 = vsel %vm1187, 1, 0
      %v1220 = vsel %vm1188, 1, 0
      %v1221 = vsel %vm1189, 1, 0
      %v1222 = vsel %vm1190, 1, 0
      %v1223 = vsel %vm1191, 1, 0
      %1224 = vset.pattern.permute.xlu0 0
      %1225 = vperm.xlu0 %1224, %v1192
      %v1226 = vpop.permute.xlu0 %1225
      %1227 = vset.pattern.permute.xlu0 0
      %1228 = vperm.xlu0 %1227, %v1193
      %v1229 = vpop.permute.xlu0 %1228
      %1230 = vset.pattern.permute.xlu0 0
      %1231 = vperm.xlu0 %1230, %v1194
      %v1232 = vpop.permute.xlu0 %1231
      %1233 = vset.pattern.permute.xlu0 0
      %1234 = vperm.xlu0 %1233, %v1195
      %v1235 = vpop.permute.xlu0 %1234
      %1236 = vset.pattern.permute.xlu0 0
      %1237 = vperm.xlu0 %1236, %v1196
      %v1238 = vpop.permute.xlu0 %1237
      %1239 = vset.pattern.permute.xlu0 0
      %1240 = vperm.xlu0 %1239, %v1197
      %v1241 = vpop.permute.xlu0 %1240
      %1242 = vset.pattern.permute.xlu0 0
      %1243 = vperm.xlu0 %1242, %v1198
      %v1244 = vpop.permute.xlu0 %1243
      %1245 = vset.pattern.permute.xlu0 0
      %1246 = vperm.xlu0 %1245, %v1199
      %v1247 = vpop.permute.xlu0 %1246
      %1248 = vset.pattern.permute.xlu0 0
      %1249 = vperm.xlu0 %1248, %v1200
      %v1250 = vpop.permute.xlu0 %1249
      %1251 = vset.pattern.permute.xlu0 0
      %1252 = vperm.xlu0 %1251, %v1201
      %v1253 = vpop.permute.xlu0 %1252
      %1254 = vset.pattern.permute.xlu0 0
      %1255 = vperm.xlu0 %1254, %v1202
      %v1256 = vpop.permute.xlu0 %1255
      %1257 = vset.pattern.permute.xlu0 0
      %1258 = vperm.xlu0 %1257, %v1203
      %v1259 = vpop.permute.xlu0 %1258
      %1260 = vset.pattern.permute.xlu0 0
      %1261 = vperm.xlu0 %1260, %v1204
      %v1262 = vpop.permute.xlu0 %1261
      %1263 = vset.pattern.permute.xlu0 0
      %1264 = vperm.xlu0 %1263, %v1205
      %v1265 = vpop.permute.xlu0 %1264
      %1266 = vset.pattern.permute.xlu0 0
      %1267 = vperm.xlu0 %1266, %v1206
      %v1268 = vpop.permute.xlu0 %1267
      %1269 = vset.pattern.permute.xlu0 0
      %1270 = vperm.xlu0 %1269, %v1207
      %v1271 = vpop.permute.xlu0 %1270
      %1272 = vset.pattern.permute.xlu0 0
      %1273 = vperm.xlu0 %1272, %v1208
      %v1274 = vpop.permute.xlu0 %1273
      %1275 = vset.pattern.permute.xlu0 0
      %1276 = vperm.xlu0 %1275, %v1209
      %v1277 = vpop.permute.xlu0 %1276
      %1278 = vset.pattern.permute.xlu0 0
      %1279 = vperm.xlu0 %1278, %v1210
      %v1280 = vpop.permute.xlu0 %1279
      %1281 = vset.pattern.permute.xlu0 0
      %1282 = vperm.xlu0 %1281, %v1211
      %v1283 = vpop.permute.xlu0 %1282
      %1284 = vset.pattern.permute.xlu0 0
      %1285 = vperm.xlu0 %1284, %v1212
      %v1286 = vpop.permute.xlu0 %1285
      %1287 = vset.pattern.permute.xlu0 0
      %1288 = vperm.xlu0 %1287, %v1213
      %v1289 = vpop.permute.xlu0 %1288
      %1290 = vset.pattern.permute.xlu0 0
      %1291 = vperm.xlu0 %1290, %v1214
      %v1292 = vpop.permute.xlu0 %1291
      %1293 = vset.pattern.permute.xlu0 0
      %1294 = vperm.xlu0 %1293, %v1215
      %v1295 = vpop.permute.xlu0 %1294
      %1296 = vset.pattern.permute.xlu0 0
      %1297 = vperm.xlu0 %1296, %v1216
      %v1298 = vpop.permute.xlu0 %1297
      %1299 = vset.pattern.permute.xlu0 0
      %1300 = vperm.xlu0 %1299, %v1217
      %v1301 = vpop.permute.xlu0 %1300
      %1302 = vset.pattern.permute.xlu0 0
      %1303 = vperm.xlu0 %1302, %v1218
      %v1304 = vpop.permute.xlu0 %1303
      %1305 = vset.pattern.permute.xlu0 0
      %1306 = vperm.xlu0 %1305, %v1219
      %v1307 = vpop.permute.xlu0 %1306
      %1308 = vset.pattern.permute.xlu0 0
      %1309 = vperm.xlu0 %1308, %v1220
      %v1310 = vpop.permute.xlu0 %1309
      %1311 = vset.pattern.permute.xlu0 0
      %1312 = vperm.xlu0 %1311, %v1221
      %v1313 = vpop.permute.xlu0 %1312
      %1314 = vset.pattern.permute.xlu0 0
      %1315 = vperm.xlu0 %1314, %v1222
      %v1316 = vpop.permute.xlu0 %1315
      %1317 = vset.pattern.permute.xlu0 0
      %1318 = vperm.xlu0 %1317, %v1223
      %v1319 = vpop.permute.xlu0 %1318
      %vm1320 = vcmp.eq.s32.totalorder %v1226, 1
      %vm1321 = vcmp.eq.s32.totalorder %v1229, 1
      %vm1322 = vcmp.eq.s32.totalorder %v1232, 1
      %vm1323 = vcmp.eq.s32.totalorder %v1235, 1
      %vm1324 = vcmp.eq.s32.totalorder %v1238, 1
      %vm1325 = vcmp.eq.s32.totalorder %v1241, 1
      %vm1326 = vcmp.eq.s32.totalorder %v1244, 1
      %vm1327 = vcmp.eq.s32.totalorder %v1247, 1
      %vm1328 = vcmp.eq.s32.totalorder %v1250, 1
      %vm1329 = vcmp.eq.s32.totalorder %v1253, 1
      %vm1330 = vcmp.eq.s32.totalorder %v1256, 1
      %vm1331 = vcmp.eq.s32.totalorder %v1259, 1
      %vm1332 = vcmp.eq.s32.totalorder %v1262, 1
      %vm1333 = vcmp.eq.s32.totalorder %v1265, 1
      %vm1334 = vcmp.eq.s32.totalorder %v1268, 1
      %vm1335 = vcmp.eq.s32.totalorder %v1271, 1
      %vm1336 = vcmp.eq.s32.totalorder %v1274, 1
      %vm1337 = vcmp.eq.s32.totalorder %v1277, 1
      %vm1338 = vcmp.eq.s32.totalorder %v1280, 1
      %vm1339 = vcmp.eq.s32.totalorder %v1283, 1
      %vm1340 = vcmp.eq.s32.totalorder %v1286, 1
      %vm1341 = vcmp.eq.s32.totalorder %v1289, 1
      %vm1342 = vcmp.eq.s32.totalorder %v1292, 1
      %vm1343 = vcmp.eq.s32.totalorder %v1295, 1
      %vm1344 = vcmp.eq.s32.totalorder %v1298, 1
      %vm1345 = vcmp.eq.s32.totalorder %v1301, 1
      %vm1346 = vcmp.eq.s32.totalorder %v1304, 1
      %vm1347 = vcmp.eq.s32.totalorder %v1307, 1
      %vm1348 = vcmp.eq.s32.totalorder %v1310, 1
      %vm1349 = vcmp.eq.s32.totalorder %v1313, 1
      %vm1350 = vcmp.eq.s32.totalorder %v1316, 1
      %vm1351 = vcmp.eq.s32.totalorder %v1319, 1
      %v1352 = vsel %vm1320, %v601, %v1128
      %v1353 = vsel %vm1321, %v603, %v1129
      %v1354 = vsel %vm1322, %v606, %v1130
      %v1355 = vsel %vm1323, %v608, %v1131
      %v1356 = vsel %vm1324, %v611, %v1132
      %v1357 = vsel %vm1325, %v613, %v1133
      %v1358 = vsel %vm1326, %v616, %v1134
      %v1359 = vsel %vm1327, %v618, %v1135
      %v1360 = vsel %vm1328, %v621, %v1136
      %v1361 = vsel %vm1329, %v623, %v1137
      %v1362 = vsel %vm1330, %v626, %v1138
      %v1363 = vsel %vm1331, %v628, %v1139
      %v1364 = vsel %vm1332, %v631, %v1140
      %v1365 = vsel %vm1333, %v633, %v1141
      %v1366 = vsel %vm1334, %v636, %v1142
      %v1367 = vsel %vm1335, %v638, %v1143
      %v1368 = vsel %vm1336, %v641, %v1144
      %v1369 = vsel %vm1337, %v643, %v1145
      %v1370 = vsel %vm1338, %v646, %v1146
      %v1371 = vsel %vm1339, %v648, %v1147
      %v1372 = vsel %vm1340, %v651, %v1148
      %v1373 = vsel %vm1341, %v653, %v1149
      %v1374 = vsel %vm1342, %v656, %v1150
      %v1375 = vsel %vm1343, %v658, %v1151
      %v1376 = vsel %vm1344, %v661, %v1152
      %v1377 = vsel %vm1345, %v663, %v1153
      %v1378 = vsel %vm1346, %v666, %v1154
      %v1379 = vsel %vm1347, %v668, %v1155
      %v1380 = vsel %vm1348, %v671, %v1156
      %v1381 = vsel %vm1349, %v673, %v1157
      %v1382 = vsel %vm1350, %v676, %v1158
      %v1383 = vsel %vm1351, %v678, %v1159
      %1384 = vst [vmem:[%s221] sm:$0xff] %v1352
      %1385 = vst [vmem:[%s221 + $0x8] sm:$0xff] %v1353
      %1386 = vst [vmem:[%s221 + $0x10] sm:$0xff] %v1354
      %1387 = vst [vmem:[%s221 + $0x18] sm:$0xff] %v1355
      %1388 = vst [vmem:[%s221 + $0x20] sm:$0xff] %v1356
      %1389 = vst [vmem:[%s221 + $0x28] sm:$0xff] %v1357
      %1390 = vst [vmem:[%s221 + $0x30] sm:$0xff] %v1358
      %1391 = vst [vmem:[%s221 + $0x38] sm:$0xff] %v1359
      %1392 = vst [vmem:[%s221 + $0x40] sm:$0xff] %v1360
      %1393 = vst [vmem:[%s221 + $0x48] sm:$0xff] %v1361
      %1394 = vst [vmem:[%s221 + $0x50] sm:$0xff] %v1362
      %1395 = vst [vmem:[%s221 + $0x58] sm:$0xff] %v1363
      %1396 = vst [vmem:[%s221 + $0x60] sm:$0xff] %v1364
      %1397 = vst [vmem:[%s221 + $0x68] sm:$0xff] %v1365
      %1398 = vst [vmem:[%s221 + $0x70] sm:$0xff] %v1366
      %1399 = vst [vmem:[%s221 + $0x78] sm:$0xff] %v1367
      %1400 = vst [vmem:[%s221 + $0x80] sm:$0xff] %v1368
      %1401 = vst [vmem:[%s221 + $0x88] sm:$0xff] %v1369
      %1402 = vst [vmem:[%s221 + $0x90] sm:$0xff] %v1370
      %1403 = vst [vmem:[%s221 + $0x98] sm:$0xff] %v1371
      %1404 = vst [vmem:[%s221 + $0xa0] sm:$0xff] %v1372
      %1405 = vst [vmem:[%s221 + $0xa8] sm:$0xff] %v1373
      %1406 = vst [vmem:[%s221 + $0xb0] sm:$0xff] %v1374
      %1407 = vst [vmem:[%s221 + $0xb8] sm:$0xff] %v1375
      %1408 = vst [vmem:[%s221 + $0xc0] sm:$0xff] %v1376
      %1409 = vst [vmem:[%s221 + $0xc8] sm:$0xff] %v1377
      %1410 = vst [vmem:[%s221 + $0xd0] sm:$0xff] %v1378
      %1411 = vst [vmem:[%s221 + $0xd8] sm:$0xff] %v1379
      %1412 = vst [vmem:[%s221 + $0xe0] sm:$0xff] %v1380
      %1413 = vst [vmem:[%s221 + $0xe8] sm:$0xff] %v1381
      %1414 = vst [vmem:[%s221 + $0xf0] sm:$0xff] %v1382
      %1415 = vst [vmem:[%s221 + $0xf8] sm:$0xff] %v1383
      %s1416 = smul.u32 32, %s15
      %p1417 = scmp.lt.s32.totalorder %s1416, 63
      %s1418 = scalar_select %p1417, %s1416, 63
      %s1419 = smul.addr %s1418, 8
      %s1420 = scalar_lea.vmem %s4, %s1419
      // Predicated region
      $region37: #{meta_hetero_linear_pallas.1} parent=35 // pred_check
        %p1421 = pneg %p127
      $region38: #{meta_hetero_linear_pallas.1} parent=35 // pred_check_branch
        %1423 = sbr.rel (%p1421) target = $region40
      $region39: #{meta_hetero_linear_pallas.1} parent=35 // pred_region
        %s1424 = smul.u32 32, %s15
      $region40: #{meta_hetero_linear_pallas.1} parent=35 // pred_fallthru
        _
    $region36: #{meta_hetero_linear_pallas.1} parent=5 // pred_fallthru
      _
    %p1425 = scmp.le.s32.totalorder 2, %s10
    // Predicated region
    $region41: #{meta_hetero_linear_pallas.1} parent=5 // pred_check
      %p1426 = pneg %p1425
    $region42: #{meta_hetero_linear_pallas.1} parent=5 // pred_check_branch
      %1428 = sbr.rel (%p1426) target = $region44
    $region43: #{meta_hetero_linear_pallas.1} parent=5 // pred_region
      %s1429 = ssub.s32 %s10, 2
      // Predicated region
      $region45: #{meta_hetero_linear_pallas.1} parent=43 // pred_check
        %p1430 = pneg %p133
      $region46: #{meta_hetero_linear_pallas.1} parent=43 // pred_check_branch
        %1432 = sbr.rel (%p1430) target = $region48
      $region47: #{meta_hetero_linear_pallas.1} parent=43 // pred_region
        %s1433 = smul.u32 32, %s16
        %p1434 = scmp.lt.s32.totalorder %s1433, 63
        %s1435 = scalar_select %p1434, %s1433, 63
        %s1436 = smul.addr %s1435, 8
        %s1437 = scalar_lea.vmem %s4, %s1436
      $region48: #{meta_hetero_linear_pallas.1} parent=43 // pred_fallthru
        _
    $region44: #{meta_hetero_linear_pallas.1} parent=5 // pred_fallthru
      _
  $region6: #{meta_hetero_linear_pallas.1} parent=0 // loop_footer
    %s14 = sadd.s32 1, %s10
  $region7: #{meta_hetero_linear_pallas.1} parent=0 // loop_footer_branch
    %9 = sbr.rel target = $region3
  $region8: #{meta_hetero_linear_pallas.1} parent=0 // loop_exit
    _

</llo_original>
